<compile_context>
chip_gen: v7x
topology: tpu7x:2x2x1
jax: 0.10.0
libtpu: 0.0.40
codegen_flags: <defaults>
</compile_context>

<pallas_src>
import functools

import jax
import jax.numpy as jnp
from jax.experimental import pallas as pl
from jax.experimental.pallas import tpu as pltpu

ADD_FEATURES = 7
SQRT_HALF = 0.7071067811865476
BN_EPS = 1e-5


def _gelu_exact(x):
    # F.gelu default (exact erf formulation); erf/exp live on the EUP slot (free next to the VPU).
    return 0.5 * x * (1.0 + jax.lax.erf(x * SQRT_HALF))


# ----------------------------------------------------------------------------------------------
# Kernel 1: stream Ahat over node tiles, accumulate per-core-partition partials.
# ----------------------------------------------------------------------------------------------
def gcn_stream_kernel(a_ref, x_ref, wc_ref, bc_ref, pool_ref,
                      sum_h_ref, sum_h2_ref, pooled_ref):
    k = pl.program_id(1)

    @pl.when(k == 0)
    def _init():
        sum_h_ref[...] = jnp.zeros_like(sum_h_ref)
        sum_h2_ref[...] = jnp.zeros_like(sum_h2_ref)
        pooled_ref[...] = jnp.zeros_like(pooled_ref)

    # rank-1 GCNConv on this node tile: x has ONE feature, so Ahat @ (X @ Wc) == (Ahat @ x) ⊗ Wc.
    # VPU broadcast-multiply + cross-lane row-sum, then an outer-product broadcast (no K=1 matmul).
    a = a_ref[...].astype(jnp.float32)                      # bf16 stream -> f32 accumulate
    v = jnp.sum(a * x_ref[...], axis=1, keepdims=True)      # [tm, 1]
    h = _gelu_exact(v * wc_ref[...] + bc_ref[...])          # [tm, C]

    # one-pass BatchNorm statistics over nodes (partial per core partition)
    sum_h_ref[...] += jnp.sum(h, axis=0, keepdims=True)
    sum_h2_ref[...] += jnp.sum(h * h, axis=0, keepdims=True)

    # partial mean-pool: pool_tile [B, tm] @ h [tm, C]  (native MXU (M,K)x(K,N) orientation)
    pooled_ref[...] += jax.lax.dot_general(
        pool_ref[...], h,
        dimension_numbers=(((1,), (0,)), ((), ())),
        preferred_element_type=jnp.float32)


# ----------------------------------------------------------------------------------------------
# Kernel 2: combine partials, BN affine on pooled features, MLP tail.
# ----------------------------------------------------------------------------------------------
def gcn_tail_kernel(sum_h_ref, sum_h2_ref, pooled_ref, gamma_ref, beta_ref,
                    y_ref, w1a_ref, w1b_ref, b1_ref, w2_ref, b2_ref, out_ref, *, inv_n):
    f32 = jnp.float32
    sum_h = jnp.sum(sum_h_ref[...], axis=0)          # [1, C]
    sum_h2 = jnp.sum(sum_h2_ref[...], axis=0)        # [1, C]
    pooled = jnp.sum(pooled_ref[...], axis=0)        # [B, C]

    mean = sum_h * inv_n
    var = sum_h2 * inv_n - mean * mean               # biased variance (BatchNorm training stats)
    # TODO(synk): one-pass E[h^2]-E[h]^2 can lose precision for very large N; switch to a
    # two-pass / shifted accumulation if var << mean^2 regimes show up.
    scale = gamma_ref[...] * jax.lax.rsqrt(var + BN_EPS)
    p = (pooled - mean) * scale + beta_ref[...]      # BN affine commutes with mean-pool

    # cat((p, y), 1) @ W1 == p @ W1a + y @ W1b  (W1 split along its input dim)
    z = (jnp.dot(p, w1a_ref[...], preferred_element_type=f32)
         + jnp.dot(y_ref[...], w1b_ref[...], preferred_element_type=f32)
         + b1_ref[...])
    z = _gelu_exact(z)

    logits = jnp.dot(z, w2_ref[...], preferred_element_type=f32) + b2_ref[...]
    out_ref[...] = 1.0 / (1.0 + jnp.exp(-logits))


# ----------------------------------------------------------------------------------------------
# Wrapper
# ----------------------------------------------------------------------------------------------
def _vmem_budget_bytes():
    try:
        cap = pltpu.get_tpu_info().vmem_capacity_bytes
    except Exception:
        cap = 64 << 20                       # conservative (v7x-sized) fallback
    # ~100 MiB on 128 MiB parts (v5e/v6e), ~48 MiB on 64 MiB parts (v7x); headroom for
    # double-buffering bookkeeping and resident constants.
    return min(100 << 20, int(cap * 3 // 4))


def _pick_node_tile(N, B, C, a_itemsize, budget_bytes):
    # resident: x row, conv weights, per-partition partial outputs + 2 MiB slack
    resident = 4 * (N + 2 * C + 2 * (2 * C + B * C)) + (2 << 20)

    def fits(tm):
        stream = 2 * tm * (N * a_itemsize + B * 4)   # double-buffered Ahat + pool tiles
        return stream + resident <= budget_bytes

    if fits(N):
        return N                                     # small-N fast path: grid collapses to 1 tile
    cands = sorted((m for m in range(128, N, 128) if N % m == 0), reverse=True)
    for tm in cands:
        if fits(tm):
            return tm
    # TODO(synk): for very large N (or N with no fitting 128-multiple divisor) add a column (k)
    # grid axis over Ahat with a partial-v accumulator so VMEM is O(tm*tk) instead of O(tm*N).
    raise ValueError("no node tile fits the VMEM budget; column tiling over Ahat is required")


def gcn_forward(a_hat, x, wc, bc, gamma, beta, pool_mat, yfeat,
                w1a, w1b, b1, w2, b2, *, stream_dtype=jnp.bfloat16):
    N = a_hat.shape[0]
    B, F = yfeat.shape
    C = wc.shape[1]
    H1 = b1.shape[1]
    OUT = b2.shape[1]

    a_stream = a_hat.astype(stream_dtype)            # halve the dominant N^2 HBM traffic
    a_bytes = jnp.dtype(stream_dtype).itemsize
    xT = x.reshape(1, N)                             # node feature column as a lane-dense row

    budget = _vmem_budget_bytes()
    tm = _pick_node_tile(N, B, C, a_bytes, budget)
    n_tiles = N // tm

    # Leading "parallel" core-partition axis: on v7x the two TensorCores split the node stream;
    # on 1-TC chips (v5e/v6e) the extra partial-combine is negligible.
    # TODO(synk): query the real TensorCore count instead of defaulting to 2 partitions.
    P = 2 if (n_tiles >= 2 and n_tiles % 2 == 0) else 1
    inner = n_tiles // P

    flops = (2 * N * N                                # Ahat @ x (VPU mul + reduce)
             + 10 * N * C                             # outer product / gelu / stat sums
             + 2 * N * B * C                          # pooling matmul
             + 2 * B * ((C + F) * H1 + H1 * OUT))     # MLP tail (kernel 2)
    transcendentals = N * C + B * H1 + B * OUT
    bytes_accessed = (a_bytes * N * N
                      + 4 * (N + B * N + 2 * C + P * (2 * C + B * C)))

    sum_h_parts, sum_h2_parts, pooled_parts = pl.pallas_call(
        gcn_stream_kernel,
        out_shape=(
            jax.ShapeDtypeStruct((P, 1, C), jnp.float32),
            jax.ShapeDtypeStruct((P, 1, C), jnp.float32),
            jax.ShapeDtypeStruct((P, B, C), jnp.float32),
        ),
        grid_spec=pltpu.PrefetchScalarGridSpec(
            num_scalar_prefetch=0,
            grid=(P, inner),
            in_specs=[
                pl.BlockSpec((tm, N), lambda p, k: (p * inner + k, 0)),    # Ahat row tile (bf16)
                pl.BlockSpec((1, N), lambda p, k: (0, 0)),                 # x^T (resident)
                pl.BlockSpec((1, C), lambda p, k: (0, 0)),                 # Wc
                pl.BlockSpec((1, C), lambda p, k: (0, 0)),                 # bc
                pl.BlockSpec((B, tm), lambda p, k: (0, p * inner + k)),    # pool tile [B, tm]
            ],
            out_specs=(
                pl.BlockSpec((None, 1, C), lambda p, k: (p, 0, 0)),        # partial sum(h)
                pl.BlockSpec((None, 1, C), lambda p, k: (p, 0, 0)),        # partial sum(h^2)
                pl.BlockSpec((None, B, C), lambda p, k: (p, 0, 0)),        # partial pooled
            )),
        compiler_params=pltpu.CompilerParams(
            dimension_semantics=("parallel", "arbitrary"),
            vmem_limit_bytes=budget),
        cost_estimate=pl.CostEstimate(
            flops=flops,
            transcendentals=transcendentals,
            bytes_accessed=bytes_accessed),
    )(a_stream, xT, wc, bc, pool_mat)

    tail = functools.partial(gcn_tail_kernel, inv_n=1.0 / N)
    return pl.pallas_call(
        tail,
        out_shape=jax.ShapeDtypeStruct((B, OUT), jnp.float32),
    )(sum_h_parts, sum_h2_parts, pooled_parts, gamma, beta, yfeat,
      w1a, w1b, b1, w2, b2)


# ----------------------------------------------------------------------------------------------
# Pure-JAX reference (module semantics)
# ----------------------------------------------------------------------------------------------
def reference_forward(a_hat, x, wc, bc, gamma, beta, pool_mat, yfeat, w1a, w1b, b1, w2, b2):
    h = _gelu_exact(a_hat @ (x @ wc) + bc)
    mean = jnp.mean(h, axis=0, keepdims=True)
    var = jnp.mean((h - mean) ** 2, axis=0, keepdims=True)
    h = (h - mean) / jnp.sqrt(var + BN_EPS) * gamma + beta
    pooled = pool_mat @ h
    z = _gelu_exact(pooled @ w1a + yfeat @ w1b + b1)
    return jax.nn.sigmoid(z @ w2 + b2)


if __name__ == "__main__":
    # Small deterministic problem: 8 graphs x 8 nodes = 64 nodes, 1 input feature.
    N = 64          # total nodes
    B = 8           # graphs in the batch
    NODES_PER_G = N // B
    C = 256         # GCNConv out channels (== hidden_channels for bn1)
    H1 = 128        # lin1 out
    OUT = 2         # lin2 out

    key = jax.random.PRNGKey(0)
    k = jax.random.split(key, 10)

    # Node features x: [N, 1]
    x = jax.random.normal(k[0], (N, 1), dtype=jnp.float32)

    # Synthetic edge_index: bidirectional ring inside each graph.
    src_list, dst_list = [], []
    for g in range(B):
        base = g * NODES_PER_G
        for i in range(NODES_PER_G):
            a = base + i
            b = base + (i + 1) % NODES_PER_G
            src_list += [a, b]
            dst_list += [b, a]
    src = jnp.asarray(src_list, dtype=jnp.int32)
    dst = jnp.asarray(dst_list, dtype=jnp.int32)

    # Dense symmetric-normalized adjacency with self loops:  Ahat = D^-1/2 (A + I) D^-1/2
    A = jnp.zeros((N, N), dtype=jnp.float32).at[dst, src].set(1.0)
    A = A + jnp.eye(N, dtype=jnp.float32)
    deg = A.sum(axis=1)
    dinv = jax.lax.rsqrt(deg)
    a_hat = dinv[:, None] * A * dinv[None, :]

    # batch vector and the mean-pooling matrix [B, N]
    batch = jnp.repeat(jnp.arange(B, dtype=jnp.int32), NODES_PER_G)
    onehot = (batch[None, :] == jnp.arange(B, dtype=jnp.int32)[:, None]).astype(jnp.float32)
    pool_mat = onehot / onehot.sum(axis=1, keepdims=True)

    # data.y[1]: extra graph-level features [B, ADD_FEATURES]
    yfeat = jax.random.normal(k[1], (B, ADD_FEATURES), dtype=jnp.float32)

    # Deterministic parameter init (shapes follow the module's __init__).
    wc = jax.random.normal(k[2], (1, C), dtype=jnp.float32) * 0.5        # GCNConv weight
    bc = jax.random.normal(k[3], (1, C), dtype=jnp.float32) * 0.1        # GCNConv bias
    gamma = 1.0 + 0.1 * jax.random.normal(k[4], (1, C), dtype=jnp.float32)
    beta = 0.1 * jax.random.normal(k[5], (1, C), dtype=jnp.float32)
    w1 = jax.random.normal(k[6], (C + ADD_FEATURES, H1), dtype=jnp.float32) * 0.06
    b1 = 0.05 * jax.random.normal(k[7], (1, H1), dtype=jnp.float32)
    w2 = jax.random.normal(k[8], (H1, OUT), dtype=jnp.float32) * 0.09
    b2 = 0.05 * jax.random.normal(k[9], (1, OUT), dtype=jnp.float32)

    # Split W1 so that cat((pooled, y), 1) @ W1 becomes two matmuls (no in-kernel concat).
    w1a = w1[:C, :]
    w1b = w1[C:, :]

    out = gcn_forward(a_hat, x, wc, bc, gamma, beta, pool_mat, yfeat,
                      w1a, w1b, b1, w2, b2)
    out = jax.block_until_ready(out)
    assert out.shape == (B, OUT)

    # Tight check: same (bf16-rounded Ahat) streaming precision as the kernel — validates the
    # kernel math itself.
    a_hat_q = a_hat.astype(jnp.bfloat16).astype(jnp.float32)
    ref_q = reference_forward(a_hat_q, x, wc, bc, gamma, beta, pool_mat, yfeat,
                              w1a, w1b, b1, w2, b2)
    assert jnp.allclose(out, ref_q, atol=5e-4, rtol=5e-4), (out, ref_q)

    # Loose check vs full-f32 reference: bounded by the bf16 Ahat stream rounding (~1e-3 typical).
    ref_f32 = reference_forward(a_hat, x, wc, bc, gamma, beta, pool_mat, yfeat,
                                w1a, w1b, b1, w2, b2)
    assert jnp.allclose(out, ref_f32, atol=1e-2, rtol=1e-2), (out, ref_f32)

    print("KERNEL_OK")
</pallas_src>

<mosaic_0001>
module attributes {stable_mosaic.version = 11 : i64} {
  func.func @gcn_stream_kernel(%arg0: i32, %arg1: i32, %arg2: memref<64x64xbf16, #tpu.memory_space<vmem>>, %arg3: memref<1x64xf32, #tpu.memory_space<vmem>>, %arg4: memref<1x256xf32, #tpu.memory_space<vmem>>, %arg5: memref<1x256xf32, #tpu.memory_space<vmem>>, %arg6: memref<8x64xf32, #tpu.memory_space<vmem>>, %arg7: memref<1x1x256xf32, #tpu.memory_space<vmem>>, %arg8: memref<1x1x256xf32, #tpu.memory_space<vmem>>, %arg9: memref<1x8x256xf32, #tpu.memory_space<vmem>>) attributes {dimension_semantics = [#tpu.dimension_semantics<parallel>, #tpu.dimension_semantics<arbitrary>], iteration_bounds = array<i64: 1, 1>, scalar_prefetch = 0 : i64, scratch_operands = 0 : i64, tpu.core_type = #tpu.core_type<tc>, window_params = [{transform_indices = @transform_0, window_bounds = array<i64: 64, 64>}, {pipeline_mode = #tpu.pipeline_mode<synchronous>, transform_indices = @transform_1, window_bounds = array<i64: 1, 64>}, {pipeline_mode = #tpu.pipeline_mode<synchronous>, transform_indices = @transform_2, window_bounds = array<i64: 1, 256>}, {pipeline_mode = #tpu.pipeline_mode<synchronous>, transform_indices = @transform_3, window_bounds = array<i64: 1, 256>}, {transform_indices = @transform_4, window_bounds = array<i64: 8, 64>}, {transform_indices = @transform_5, window_bounds = array<i64: 1, 1, 256>}, {transform_indices = @transform_6, window_bounds = array<i64: 1, 1, 256>}, {transform_indices = @transform_7, window_bounds = array<i64: 1, 8, 256>}]} {
    %c0_i32 = arith.constant 0 : i32
    %0 = arith.cmpi eq, %arg1, %c0_i32 : i32
    %1 = arith.extui %0 : i1 to i32
    %c0_i32_0 = arith.constant 0 : i32
    %2 = arith.cmpi ne, %1, %c0_i32_0 : i32
    scf.if %2 {
      %cst_34 = arith.constant 0.000000e+00 : f32
      %50 = vector.broadcast %cst_34 : f32 to vector<1x256xf32>
      %c0_35 = arith.constant 0 : index
      %c0_36 = arith.constant 0 : index
      %c0_37 = arith.constant 0 : index
      %51 = vector.load %arg7[%c0_35, %c0_36, %c0_37] : memref<1x1x256xf32, #tpu.memory_space<vmem>>, vector<1x1x256xf32>
      %52 = vector.shape_cast %51 : vector<1x1x256xf32> to vector<1x256xf32>
      %53 = vector.shape_cast %50 : vector<1x256xf32> to vector<1x1x256xf32>
      tpu.vector_store %arg7[%c0_35, %c0_36, %c0_37], %53 {strides = array<i32>} : memref<1x1x256xf32, #tpu.memory_space<vmem>>, vector<1x1x256xf32>,
      %cst_38 = arith.constant 0.000000e+00 : f32
      %54 = vector.broadcast %cst_38 : f32 to vector<1x256xf32>
      %c0_39 = arith.constant 0 : index
      %c0_40 = arith.constant 0 : index
      %c0_41 = arith.constant 0 : index
      %55 = vector.load %arg8[%c0_39, %c0_40, %c0_41] : memref<1x1x256xf32, #tpu.memory_space<vmem>>, vector<1x1x256xf32>
      %56 = vector.shape_cast %55 : vector<1x1x256xf32> to vector<1x256xf32>
      %57 = vector.shape_cast %54 : vector<1x256xf32> to vector<1x1x256xf32>
      tpu.vector_store %arg8[%c0_39, %c0_40, %c0_41], %57 {strides = array<i32>} : memref<1x1x256xf32, #tpu.memory_space<vmem>>, vector<1x1x256xf32>,
      %cst_42 = arith.constant 0.000000e+00 : f32
      %58 = vector.broadcast %cst_42 : f32 to vector<8x256xf32>
      %c0_43 = arith.constant 0 : index
      %c0_44 = arith.constant 0 : index
      %c0_45 = arith.constant 0 : index
      %59 = vector.load %arg9[%c0_43, %c0_44, %c0_45] : memref<1x8x256xf32, #tpu.memory_space<vmem>>, vector<1x8x256xf32>
      %60 = vector.shape_cast %59 : vector<1x8x256xf32> to vector<8x256xf32>
      %61 = vector.shape_cast %58 : vector<8x256xf32> to vector<1x8x256xf32>
      tpu.vector_store %arg9[%c0_43, %c0_44, %c0_45], %61 {strides = array<i32>} : memref<1x8x256xf32, #tpu.memory_space<vmem>>, vector<1x8x256xf32>,
    } else {
    }
    %c0 = arith.constant 0 : index
    %c0_1 = arith.constant 0 : index
    %3 = vector.load %arg2[%c0, %c0_1] : memref<64x64xbf16, #tpu.memory_space<vmem>>, vector<64x64xbf16>
    %4 = arith.extf %3 : vector<64x64xbf16> to vector<64x64xf32>
    %c0_2 = arith.constant 0 : index
    %c0_3 = arith.constant 0 : index
    %5 = vector.load %arg3[%c0_2, %c0_3] : memref<1x64xf32, #tpu.memory_space<vmem>>, vector<1x64xf32>
    %6 = vector.broadcast %5 : vector<1x64xf32> to vector<64x64xf32>
    %7 = arith.mulf %4, %6 : vector<64x64xf32>
    %cst = arith.constant dense<0.000000e+00> : vector<64xf32>
    %8 = vector.multi_reduction <add>, %7, %cst [1] : vector<64x64xf32> to vector<64xf32>
    %9 = vector.shape_cast %8 : vector<64xf32> to vector<64x1xf32>
    %c0_4 = arith.constant 0 : index
    %c0_5 = arith.constant 0 : index
    %10 = vector.load %arg4[%c0_4, %c0_5] : memref<1x256xf32, #tpu.memory_space<vmem>>, vector<1x256xf32>
    %11 = vector.broadcast %9 : vector<64x1xf32> to vector<64x256xf32>
    %12 = vector.broadcast %10 : vector<1x256xf32> to vector<64x256xf32>
    %13 = arith.mulf %11, %12 : vector<64x256xf32>
    %c0_6 = arith.constant 0 : index
    %c0_7 = arith.constant 0 : index
    %14 = vector.load %arg5[%c0_6, %c0_7] : memref<1x256xf32, #tpu.memory_space<vmem>>, vector<1x256xf32>
    %15 = vector.broadcast %14 : vector<1x256xf32> to vector<64x256xf32>
    %16 = arith.addf %13, %15 : vector<64x256xf32>
    %cst_8 = arith.constant 5.000000e-01 : f32
    %17 = vector.broadcast %cst_8 : f32 to vector<64x256xf32>
    %18 = arith.mulf %17, %16 : vector<64x256xf32>
    %cst_9 = arith.constant 0.707106769 : f32
    %19 = vector.broadcast %cst_9 : f32 to vector<64x256xf32>
    %20 = arith.mulf %16, %19 : vector<64x256xf32>
    %21 = math.erf %20 : vector<64x256xf32>
    %cst_10 = arith.constant 1.000000e+00 : f32
    %22 = vector.broadcast %cst_10 : f32 to vector<64x256xf32>
    %23 = arith.addf %22, %21 : vector<64x256xf32>
    %24 = arith.mulf %18, %23 : vector<64x256xf32>
    %c0_11 = arith.constant 0 : index
    %c0_12 = arith.constant 0 : index
    %c0_13 = arith.constant 0 : index
    %25 = vector.load %arg7[%c0_11, %c0_12, %c0_13] : memref<1x1x256xf32, #tpu.memory_space<vmem>>, vector<1x1x256xf32>
    %26 = vector.shape_cast %25 : vector<1x1x256xf32> to vector<1x256xf32>
    %cst_14 = arith.constant dense<0.000000e+00> : vector<256xf32>
    %27 = vector.multi_reduction <add>, %24, %cst_14 [0] : vector<64x256xf32> to vector<256xf32>
    %28 = vector.shape_cast %27 : vector<256xf32> to vector<1x256xf32>
    %29 = arith.addf %26, %28 : vector<1x256xf32>
    %c0_15 = arith.constant 0 : index
    %c0_16 = arith.constant 0 : index
    %c0_17 = arith.constant 0 : index
    %30 = vector.load %arg7[%c0_15, %c0_16, %c0_17] : memref<1x1x256xf32, #tpu.memory_space<vmem>>, vector<1x1x256xf32>
    %31 = vector.shape_cast %30 : vector<1x1x256xf32> to vector<1x256xf32>
    %32 = vector.shape_cast %29 : vector<1x256xf32> to vector<1x1x256xf32>
    tpu.vector_store %arg7[%c0_15, %c0_16, %c0_17], %32 {strides = array<i32>} : memref<1x1x256xf32, #tpu.memory_space<vmem>>, vector<1x1x256xf32>,
    %c0_18 = arith.constant 0 : index
    %c0_19 = arith.constant 0 : index
    %c0_20 = arith.constant 0 : index
    %33 = vector.load %arg8[%c0_18, %c0_19, %c0_20] : memref<1x1x256xf32, #tpu.memory_space<vmem>>, vector<1x1x256xf32>
    %34 = vector.shape_cast %33 : vector<1x1x256xf32> to vector<1x256xf32>
    %35 = arith.mulf %24, %24 : vector<64x256xf32>
    %cst_21 = arith.constant dense<0.000000e+00> : vector<256xf32>
    %36 = vector.multi_reduction <add>, %35, %cst_21 [0] : vector<64x256xf32> to vector<256xf32>
    %37 = vector.shape_cast %36 : vector<256xf32> to vector<1x256xf32>
    %38 = arith.addf %34, %37 : vector<1x256xf32>
    %c0_22 = arith.constant 0 : index
    %c0_23 = arith.constant 0 : index
    %c0_24 = arith.constant 0 : index
    %39 = vector.load %arg8[%c0_22, %c0_23, %c0_24] : memref<1x1x256xf32, #tpu.memory_space<vmem>>, vector<1x1x256xf32>
    %40 = vector.shape_cast %39 : vector<1x1x256xf32> to vector<1x256xf32>
    %41 = vector.shape_cast %38 : vector<1x256xf32> to vector<1x1x256xf32>
    tpu.vector_store %arg8[%c0_22, %c0_23, %c0_24], %41 {strides = array<i32>} : memref<1x1x256xf32, #tpu.memory_space<vmem>>, vector<1x1x256xf32>,
    %c0_25 = arith.constant 0 : index
    %c0_26 = arith.constant 0 : index
    %c0_27 = arith.constant 0 : index
    %42 = vector.load %arg9[%c0_25, %c0_26, %c0_27] : memref<1x8x256xf32, #tpu.memory_space<vmem>>, vector<1x8x256xf32>
    %43 = vector.shape_cast %42 : vector<1x8x256xf32> to vector<8x256xf32>
    %c0_28 = arith.constant 0 : index
    %c0_29 = arith.constant 0 : index
    %44 = vector.load %arg6[%c0_28, %c0_29] : memref<8x64xf32, #tpu.memory_space<vmem>>, vector<8x64xf32>
    %cst_30 = arith.constant dense<0.000000e+00> : vector<8x256xf32>
    %45 = tpu.matmul %44, %24, %cst_30 {dimension_numbers = #tpu.dot_dimension_numbers<[1], [0], [0], [1], [0, 0, 1, 1], [], []>} : vector<8x64xf32>, vector<64x256xf32>, vector<8x256xf32> -> vector<8x256xf32>
    %46 = arith.addf %43, %45 : vector<8x256xf32>
    %c0_31 = arith.constant 0 : index
    %c0_32 = arith.constant 0 : index
    %c0_33 = arith.constant 0 : index
    %47 = vector.load %arg9[%c0_31, %c0_32, %c0_33] : memref<1x8x256xf32, #tpu.memory_space<vmem>>, vector<1x8x256xf32>
    %48 = vector.shape_cast %47 : vector<1x8x256xf32> to vector<8x256xf32>
    %49 = vector.shape_cast %46 : vector<8x256xf32> to vector<1x8x256xf32>
    tpu.vector_store %arg9[%c0_31, %c0_32, %c0_33], %49 {strides = array<i32>} : memref<1x8x256xf32, #tpu.memory_space<vmem>>, vector<1x8x256xf32>,
    return
  }
  func.func @transform_0(%arg0: i32, %arg1: i32) -> (i32, i32) {
    %c1_i32 = arith.constant 1 : i32
    %0 = arith.muli %arg0, %c1_i32 : i32
    %1 = arith.addi %0, %arg1 : i32
    %c0_i32 = arith.constant 0 : i32
    %c0_i32_0 = arith.constant 0 : i32
    return %1, %c0_i32 : i32, i32
  }
  func.func @transform_1(%arg0: i32, %arg1: i32) -> (i32, i32) {
    %c0_i32 = arith.constant 0 : i32
    %c0_i32_0 = arith.constant 0 : i32
    %c0_i32_1 = arith.constant 0 : i32
    return %c0_i32, %c0_i32_0 : i32, i32
  }
  func.func @transform_2(%arg0: i32, %arg1: i32) -> (i32, i32) {
    %c0_i32 = arith.constant 0 : i32
    %c0_i32_0 = arith.constant 0 : i32
    %c0_i32_1 = arith.constant 0 : i32
    return %c0_i32, %c0_i32_0 : i32, i32
  }
  func.func @transform_3(%arg0: i32, %arg1: i32) -> (i32, i32) {
    %c0_i32 = arith.constant 0 : i32
    %c0_i32_0 = arith.constant 0 : i32
    %c0_i32_1 = arith.constant 0 : i32
    return %c0_i32, %c0_i32_0 : i32, i32
  }
  func.func @transform_4(%arg0: i32, %arg1: i32) -> (i32, i32) {
    %c1_i32 = arith.constant 1 : i32
    %0 = arith.muli %arg0, %c1_i32 : i32
    %1 = arith.addi %0, %arg1 : i32
    %c0_i32 = arith.constant 0 : i32
    %c0_i32_0 = arith.constant 0 : i32
    return %c0_i32, %1 : i32, i32
  }
  func.func @transform_5(%arg0: i32, %arg1: i32) -> (i32, i32, i32) {
    %c0_i32 = arith.constant 0 : i32
    %c0_i32_0 = arith.constant 0 : i32
    %c0_i32_1 = arith.constant 0 : i32
    return %arg0, %c0_i32, %c0_i32_0 : i32, i32, i32
  }
  func.func @transform_6(%arg0: i32, %arg1: i32) -> (i32, i32, i32) {
    %c0_i32 = arith.constant 0 : i32
    %c0_i32_0 = arith.constant 0 : i32
    %c0_i32_1 = arith.constant 0 : i32
    return %arg0, %c0_i32, %c0_i32_0 : i32, i32, i32
  }
  func.func @transform_7(%arg0: i32, %arg1: i32) -> (i32, i32, i32) {
    %c0_i32 = arith.constant 0 : i32
    %c0_i32_0 = arith.constant 0 : i32
    %c0_i32_1 = arith.constant 0 : i32
    return %arg0, %c0_i32, %c0_i32_0 : i32, i32, i32
  }
}

</mosaic_0001>

<llo_original>
// kernel: tpu_custom_call.1
$region0: #{tpu_custom_call.1}
  #allocation0 [shape = 'u32[]', space=smem, size = 0x4, offset = 0x4, fixed_abs, tag = 'smem constant byte address 0x4 - core index']
  #allocation1 [shape = 'u32[144,128]{1,0:T(1,128)}', space=vmem, size = 0x12000, scoped, tag = 'internal scratch']
  %s0 = inlined_call_operand.hbm [shape: bf16[64,64], index: 0, kind: input, shape index: {}]
  %s1 = inlined_call_operand.vmem [shape: f32[1,64], index: 1, kind: input, shape index: {}]
  %s2 = inlined_call_operand.vmem [shape: f32[1,256], index: 2, kind: input, shape index: {}]
  %s3 = inlined_call_operand.vmem [shape: f32[1,256], index: 3, kind: input, shape index: {}]
  %s4 = inlined_call_operand.vmem [shape: f32[8,64], index: 4, kind: input, shape index: {}]
  %s5 = inlined_call_operand.hbm [shape: f32[1,1,256], index: 5, kind: output, shape index: {0}]
  %s6 = inlined_call_operand.hbm [shape: f32[1,1,256], index: 6, kind: output, shape index: {1}]
  %s7 = inlined_call_operand.hbm [shape: f32[1,8,256], index: 7, kind: output, shape index: {2}]
  %8 = xla_tuple %s5, %s6, %s7
  %s9 = sld [smem:[#allocation0]]
  $region54: #{tpu_custom_call.1} parent=0
    _
  %s11 = ssub.s32 1, %s9
  %s12 = scalar_select 0, %s11, %s9
  $region1: #{tpu_custom_call.1} parent=0
    #allocation2 [shape = 'u8[16384]{0}', space=vmem, size = 0x4000, scoped, tag = 'input window, operand 0, single buffered']
    #allocation3 [shape = 's32[1]{0}', space=sflag, size = 0x4, scoped, tag = 'scoped memory for tpu_custom_call.1']
    #allocation4 [shape = 's32[1]{0}', space=sflag, size = 0x4, scoped, tag = 'scoped memory for tpu_custom_call.1']
    #allocation5 [shape = 'u8[1024]{0}', space=vmem, size = 0x400, scoped, tag = 'output window, operand 0, single buffered']
    #allocation6 [shape = 'u8[1024]{0}', space=vmem, size = 0x400, scoped, tag = 'output window, operand 1, single buffered']
    #allocation7 [shape = 's32[1]{0}', space=sflag, size = 0x4, scoped, tag = 'scoped memory for tpu_custom_call.1']
    #allocation8 [shape = 'u8[8192]{0}', space=vmem, size = 0x2000, scoped, tag = 'output window, operand 2, single buffered']
    %13 = vsyncpa [#allocation3], 0
    %14 = vsyncpa [#allocation4], 0
    %15 = vsyncpa [#allocation7], 0
    // Predicated region
    $region2: #{tpu_custom_call.1} parent=1 // pred_check
      _
    $region3: #{tpu_custom_call.1} parent=1 // pred_check_branch
      %17 = sbr.rel (0) target = $region5
    $region4: #{tpu_custom_call.1} parent=1 // pred_region
      %s18 = sadd.s32 0, 0
      %s19 = smul.u32 8, %s18
      %s21 = ssub.s32 512, 512
      %22 = vsyncadd [#allocation3], %s21
      %s23 = smul.addr %s19, 64
      %s24 = scalar_lea.hbm %s0, %s23
      %s25 = sshll.u32 [#allocation2], 4
      %s26 = int_to_ptr.vmem [resolvable:$true] %s25
      %31 = dma.hbm_to_vmem [thread:$0]  %s24, 512, %s26, [#allocation3], 64, 64, 4
    $region5: #{tpu_custom_call.1} parent=1 // pred_fallthru
      _
    // Predicated region
    $region6: #{tpu_custom_call.1} parent=1 // pred_check
      _
    $region7: #{tpu_custom_call.1} parent=1 // pred_check_branch
      %33 = sbr.rel (0) target = $region9
    $region8: #{tpu_custom_call.1} parent=1 // pred_region
      _
    $region9: #{tpu_custom_call.1} parent=1 // pred_fallthru
      _
    // Predicated region
    $region10: #{tpu_custom_call.1} parent=1 // pred_check
      _
    $region11: #{tpu_custom_call.1} parent=1 // pred_check_branch
      %35 = sbr.rel (0) target = $region13
    $region12: #{tpu_custom_call.1} parent=1 // pred_region
      _
    $region13: #{tpu_custom_call.1} parent=1 // pred_fallthru
      _
    // Predicated region
    $region14: #{tpu_custom_call.1} parent=1 // pred_check
      _
    $region15: #{tpu_custom_call.1} parent=1 // pred_check_branch
      %37 = sbr.rel (0) target = $region17
    $region16: #{tpu_custom_call.1} parent=1 // pred_region
      _
    $region17: #{tpu_custom_call.1} parent=1 // pred_fallthru
      _
    // Predicated region
    $region18: #{tpu_custom_call.1} parent=1 // pred_check
      _
    $region19: #{tpu_custom_call.1} parent=1 // pred_check_branch
      %39 = sbr.rel (0) target = $region21
    $region20: #{tpu_custom_call.1} parent=1 // pred_region
      %s40 = sadd.s32 0, 0
      %p41 = scmp.lt.s32.totalorder %s40, 0
      %s42 = scalar_select %p41, %s40, 0
      %s43 = smul.addr %s42, 8
      %s44 = scalar_lea.vmem %s4, %s43
      %s45 = sadd.s32 0, 0
    $region21: #{tpu_custom_call.1} parent=1 // pred_fallthru
      _
    // Predicated region
    $region22: #{tpu_custom_call.1} parent=1 // pred_check
      _
    $region23: #{tpu_custom_call.1} parent=1 // pred_check_branch
      %47 = sbr.rel (0) target = $region25
    $region24: #{tpu_custom_call.1} parent=1 // pred_region
      %48 = dma.done [#allocation3], 512
    $region25: #{tpu_custom_call.1} parent=1 // pred_fallthru
      _
    %s49 = sadd.s32 0, 0
    %p50 = scmp.lt.s32.totalorder %s49, 0
    %s51 = scalar_select %p50, %s49, 0
    %s52 = smul.addr %s51, 8
    %s53 = scalar_lea.vmem %s4, %s52
    %s54 = sadd.s32 0, 0
    %s55 = smul.u32 8, %s54
    %s56 = sadd.s32 0, 0
    %p57 = scmp.lt.s32.totalorder %s56, 0
    %s58 = scalar_select %p57, %s56, 0
    %s59 = smul.addr %s58, 8
    %s60 = scalar_lea.vmem %s4, %s59
    %s61 = sadd.s32 0, 0
    %p62 = scmp.eq.s32.totalorder 0, 0
    // Predicated region
    $region26: #{tpu_custom_call.1} parent=1 // pred_check
      %p63 = pneg %p62
    $region27: #{tpu_custom_call.1} parent=1 // pred_check_branch
      %65 = sbr.rel (%p63) target = $region29
    $region28: #{tpu_custom_call.1} parent=1 // pred_region
      %v66 = vlaneseq
      %vm67 = vcmp.ge.s32.totalorder %v66, 0
      %vm68 = vcmp.lt.s32.totalorder %v66, 256
      %vm69 = vmand %vm67, %vm68
      %70 = vst.msk [vmem:[#allocation5] sm:$0x3] %vm69, 0.0
      %71 = vst.msk [vmem:[#allocation6] sm:$0x3] %vm69, 0.0
      %72 = vst [vmem:[#allocation8] sm:$0xff] 0.0
      %73 = vst [vmem:[#allocation8 + $0x8] sm:$0xff] 0.0
    $region29: #{tpu_custom_call.1} parent=1 // pred_fallthru
      _
    %v74 = vld [vmem:[#allocation2] sm:$0xf]
    %v75 = vld [vmem:[#allocation2 + $0x4] sm:$0xf]
    %v76 = vld [vmem:[#allocation2 + $0x8] sm:$0xf]
    %v77 = vld [vmem:[#allocation2 + $0xc] sm:$0xf]
    %v78 = vld [vmem:[#allocation2 + $0x10] sm:$0xf]
    %v79 = vld [vmem:[#allocation2 + $0x14] sm:$0xf]
    %v80 = vld [vmem:[#allocation2 + $0x18] sm:$0xf]
    %v81 = vld [vmem:[#allocation2 + $0x1c] sm:$0xf]
    %v82 = vunpack.c.l.bf16 %v74
    %v83 = vunpack.c.l.bf16 %v75
    %v84 = vunpack.c.l.bf16 %v76
    %v85 = vunpack.c.l.bf16 %v77
    %v86 = vunpack.c.l.bf16 %v78
    %v87 = vunpack.c.l.bf16 %v79
    %v88 = vunpack.c.l.bf16 %v80
    %v89 = vunpack.c.l.bf16 %v81
    %v90 = vld [vmem:[%s1] sm:$0x1]
    %v92 = vlaneseq
    %v93 = vshrl.u32 %v92, 7
    %v94 = vsub.s32 0, %v93
    %v95 = vrot.slane %v90, %v94
    %v97 = vmul.f32 %v82, %v95
    %v98 = vmul.f32 %v83, %v95
    %v99 = vmul.f32 %v84, %v95
    %v100 = vmul.f32 %v85, %v95
    %v101 = vmul.f32 %v86, %v95
    %v102 = vmul.f32 %v87, %v95
    %v103 = vmul.f32 %v88, %v95
    %v104 = vmul.f32 %v89, %v95
    %vm105 = vcmask 523264
    %v106 = vsel %vm105, %v97, 0.0
    %107 = vadd.xlane.f32.xlu0 %v106
    %v108 = vpop.xlane.xlu0 %107
    %v109 = vsel %vm105, %v98, 0.0
    %110 = vadd.xlane.f32.xlu0 %v109
    %v111 = vpop.xlane.xlu0 %110
    %v112 = vsel %vm105, %v99, 0.0
    %113 = vadd.xlane.f32.xlu0 %v112
    %v114 = vpop.xlane.xlu0 %113
    %v115 = vsel %vm105, %v100, 0.0
    %116 = vadd.xlane.f32.xlu0 %v115
    %v117 = vpop.xlane.xlu0 %116
    %v118 = vsel %vm105, %v101, 0.0
    %119 = vadd.xlane.f32.xlu0 %v118
    %v120 = vpop.xlane.xlu0 %119
    %v121 = vsel %vm105, %v102, 0.0
    %122 = vadd.xlane.f32.xlu0 %v121
    %v123 = vpop.xlane.xlu0 %122
    %v124 = vsel %vm105, %v103, 0.0
    %125 = vadd.xlane.f32.xlu0 %v124
    %v126 = vpop.xlane.xlu0 %125
    %v127 = vsel %vm105, %v104, 0.0
    %128 = vadd.xlane.f32.xlu0 %v127
    %v129 = vpop.xlane.xlu0 %128
    %v130 = vld [vmem:[%s2] sm:$0x3]
    %v132 = vlaneseq
    %v133 = vshrl.u32 %v132, 7
    %v134 = vsub.s32 0, %v133
    %v135 = vrot.slane %v130, %v134
    %v136 = vlaneseq
    %v137 = vshrl.u32 %v136, 7
    %v138 = vsub.s32 1, %v137
    %v139 = vrot.slane %v130, %v138
    %v142 = vmul.f32 %v108, %v135
    %v143 = vmul.f32 %v108, %v139
    %v144 = vmul.f32 %v111, %v135
    %v145 = vmul.f32 %v111, %v139
    %v146 = vmul.f32 %v114, %v135
    %v147 = vmul.f32 %v114, %v139
    %v148 = vmul.f32 %v117, %v135
    %v149 = vmul.f32 %v117, %v139
    %v150 = vmul.f32 %v120, %v135
    %v151 = vmul.f32 %v120, %v139
    %v152 = vmul.f32 %v123, %v135
    %v153 = vmul.f32 %v123, %v139
    %v154 = vmul.f32 %v126, %v135
    %v155 = vmul.f32 %v126, %v139
    %v156 = vmul.f32 %v129, %v135
    %v157 = vmul.f32 %v129, %v139
    %v158 = vld [vmem:[%s3] sm:$0x3]
    %v160 = vlaneseq
    %v161 = vshrl.u32 %v160, 7
    %v162 = vsub.s32 0, %v161
    %v163 = vrot.slane %v158, %v162
    %v164 = vlaneseq
    %v165 = vshrl.u32 %v164, 7
    %v166 = vsub.s32 1, %v165
    %v167 = vrot.slane %v158, %v166
    %v170 = vadd.f32 %v142, %v163
    %v171 = vadd.f32 %v143, %v167
    %v172 = vadd.f32 %v144, %v163
    %v173 = vadd.f32 %v145, %v167
    %v174 = vadd.f32 %v146, %v163
    %v175 = vadd.f32 %v147, %v167
    %v176 = vadd.f32 %v148, %v163
    %v177 = vadd.f32 %v149, %v167
    %v178 = vadd.f32 %v150, %v163
    %v179 = vadd.f32 %v151, %v167
    %v180 = vadd.f32 %v152, %v163
    %v181 = vadd.f32 %v153, %v167
    %v182 = vadd.f32 %v154, %v163
    %v183 = vadd.f32 %v155, %v167
    %v184 = vadd.f32 %v156, %v163
    %v185 = vadd.f32 %v157, %v167
    %v186 = vmul.f32 %v170, 0.5
    %v187 = vmul.f32 %v171, 0.5
    %v188 = vmul.f32 %v172, 0.5
    %v189 = vmul.f32 %v173, 0.5
    %v190 = vmul.f32 %v174, 0.5
    %v191 = vmul.f32 %v175, 0.5
    %v192 = vmul.f32 %v176, 0.5
    %v193 = vmul.f32 %v177, 0.5
    %v194 = vmul.f32 %v178, 0.5
    %v195 = vmul.f32 %v179, 0.5
    %v196 = vmul.f32 %v180, 0.5
    %v197 = vmul.f32 %v181, 0.5
    %v198 = vmul.f32 %v182, 0.5
    %v199 = vmul.f32 %v183, 0.5
    %v200 = vmul.f32 %v184, 0.5
    %v201 = vmul.f32 %v185, 0.5
    %v202 = vmul.f32 %v170, 0.70710677
    %v203 = vmul.f32 %v171, 0.70710677
    %v204 = vmul.f32 %v172, 0.70710677
    %v205 = vmul.f32 %v173, 0.70710677
    %v206 = vmul.f32 %v174, 0.70710677
    %v207 = vmul.f32 %v175, 0.70710677
    %v208 = vmul.f32 %v176, 0.70710677
    %v209 = vmul.f32 %v177, 0.70710677
    %v210 = vmul.f32 %v178, 0.70710677
    %v211 = vmul.f32 %v179, 0.70710677
    %v212 = vmul.f32 %v180, 0.70710677
    %v213 = vmul.f32 %v181, 0.70710677
    %v214 = vmul.f32 %v182, 0.70710677
    %v215 = vmul.f32 %v183, 0.70710677
    %v216 = vmul.f32 %v184, 0.70710677
    %v217 = vmul.f32 %v185, 0.70710677
    %v218 = verf.f32.pop %v202
    %v219 = verf.f32.pop %v203
    %v220 = verf.f32.pop %v204
    %v221 = verf.f32.pop %v205
    %v222 = verf.f32.pop %v206
    %v223 = verf.f32.pop %v207
    %v224 = verf.f32.pop %v208
    %v225 = verf.f32.pop %v209
    %v226 = verf.f32.pop %v210
    %v227 = verf.f32.pop %v211
    %v228 = verf.f32.pop %v212
    %v229 = verf.f32.pop %v213
    %v230 = verf.f32.pop %v214
    %v231 = verf.f32.pop %v215
    %v232 = verf.f32.pop %v216
    %v233 = verf.f32.pop %v217
    %v234 = vadd.f32 %v218, 1.0
    %v235 = vadd.f32 %v219, 1.0
    %v236 = vadd.f32 %v220, 1.0
    %v237 = vadd.f32 %v221, 1.0
    %v238 = vadd.f32 %v222, 1.0
    %v239 = vadd.f32 %v223, 1.0
    %v240 = vadd.f32 %v224, 1.0
    %v241 = vadd.f32 %v225, 1.0
    %v242 = vadd.f32 %v226, 1.0
    %v243 = vadd.f32 %v227, 1.0
    %v244 = vadd.f32 %v228, 1.0
    %v245 = vadd.f32 %v229, 1.0
    %v246 = vadd.f32 %v230, 1.0
    %v247 = vadd.f32 %v231, 1.0
    %v248 = vadd.f32 %v232, 1.0
    %v249 = vadd.f32 %v233, 1.0
    %v250 = vmul.f32 %v186, %v234
    %v251 = vmul.f32 %v187, %v235
    %v252 = vmul.f32 %v188, %v236
    %v253 = vmul.f32 %v189, %v237
    %v254 = vmul.f32 %v190, %v238
    %v255 = vmul.f32 %v191, %v239
    %v256 = vmul.f32 %v192, %v240
    %v257 = vmul.f32 %v193, %v241
    %v258 = vmul.f32 %v194, %v242
    %v259 = vmul.f32 %v195, %v243
    %v260 = vmul.f32 %v196, %v244
    %v261 = vmul.f32 %v197, %v245
    %v262 = vmul.f32 %v198, %v246
    %v263 = vmul.f32 %v199, %v247
    %v264 = vmul.f32 %v200, %v248
    %v265 = vmul.f32 %v201, %v249
    %v266 = vld [vmem:[#allocation5] sm:$0x3]
    %v267 = vadd.f32 %v250, %v252
    %v268 = vadd.f32 %v267, %v254
    %v269 = vadd.f32 %v268, %v256
    %v270 = vadd.f32 %v269, %v258
    %v271 = vadd.f32 %v270, %v260
    %v272 = vadd.f32 %v271, %v262
    %v273 = vadd.f32 %v272, %v264
    %v274 = vrot.slane %v273, 4
    %v275 = vadd.f32 %v273, %v274
    %v276 = vrot.slane %v275, 2
    %v277 = vadd.f32 %v275, %v276
    %v278 = vrot.slane %v277, 1
    %v279 = vadd.f32 %v277, %v278
    %v280 = vadd.f32 %v251, %v253
    %v281 = vadd.f32 %v280, %v255
    %v282 = vadd.f32 %v281, %v257
    %v283 = vadd.f32 %v282, %v259
    %v284 = vadd.f32 %v283, %v261
    %v285 = vadd.f32 %v284, %v263
    %v286 = vadd.f32 %v285, %v265
    %v287 = vrot.slane %v286, 4
    %v288 = vadd.f32 %v286, %v287
    %v289 = vrot.slane %v288, 2
    %v290 = vadd.f32 %v288, %v289
    %v291 = vrot.slane %v290, 1
    %v292 = vadd.f32 %v290, %v291
    %v295 = vcombine.low %v279, %v292
    %v297 = vunpack.c.l.s4 1966171168
    %v298 = vunpack.c.0.s8 %v297
    %v299 = vlaneseq
    %v300 = vshrl.u32 %v299, 7
    %v301 = vsub.s32 %v298, %v300
    %v302 = vrot.slane %v295, %v301
    %v304 = vunpack.c.l.s4 1966171168
    %v305 = vunpack.c.0.s8 %v304
    %v306 = vlaneseq
    %v307 = vshrl.u32 %v306, 7
    %v308 = vsub.s32 %v305, %v307
    %v309 = vrot.slane %v302, %v308
    %v311 = vadd.f32 %v266, %v309
    %v312 = vlaneseq
    %vm313 = vcmp.ge.s32.totalorder %v312, 0
    %vm314 = vcmp.lt.s32.totalorder %v312, 256
    %vm315 = vmand %vm313, %vm314
    %316 = vst.msk [vmem:[#allocation5] sm:$0x3] %vm315, %v311
    %v317 = vld [vmem:[#allocation6] sm:$0x3]
    %v318 = vmul.f32 %v250, %v250
    %v319 = vmul.f32 %v251, %v251
    %v320 = vmul.f32 %v252, %v252
    %v321 = vmul.f32 %v253, %v253
    %v322 = vmul.f32 %v254, %v254
    %v323 = vmul.f32 %v255, %v255
    %v324 = vmul.f32 %v256, %v256
    %v325 = vmul.f32 %v257, %v257
    %v326 = vmul.f32 %v258, %v258
    %v327 = vmul.f32 %v259, %v259
    %v328 = vmul.f32 %v260, %v260
    %v329 = vmul.f32 %v261, %v261
    %v330 = vmul.f32 %v262, %v262
    %v331 = vmul.f32 %v263, %v263
    %v332 = vmul.f32 %v264, %v264
    %v333 = vmul.f32 %v265, %v265
    %v334 = vadd.f32 %v318, %v320
    %v335 = vadd.f32 %v334, %v322
    %v336 = vadd.f32 %v335, %v324
    %v337 = vadd.f32 %v336, %v326
    %v338 = vadd.f32 %v337, %v328
    %v339 = vadd.f32 %v338, %v330
    %v340 = vadd.f32 %v339, %v332
    %v341 = vrot.slane %v340, 4
    %v342 = vadd.f32 %v340, %v341
    %v343 = vrot.slane %v342, 2
    %v344 = vadd.f32 %v342, %v343
    %v345 = vrot.slane %v344, 1
    %v346 = vadd.f32 %v344, %v345
    %v347 = vadd.f32 %v319, %v321
    %v348 = vadd.f32 %v347, %v323
    %v349 = vadd.f32 %v348, %v325
    %v350 = vadd.f32 %v349, %v327
    %v351 = vadd.f32 %v350, %v329
    %v352 = vadd.f32 %v351, %v331
    %v353 = vadd.f32 %v352, %v333
    %v354 = vrot.slane %v353, 4
    %v355 = vadd.f32 %v353, %v354
    %v356 = vrot.slane %v355, 2
    %v357 = vadd.f32 %v355, %v356
    %v358 = vrot.slane %v357, 1
    %v359 = vadd.f32 %v357, %v358
    %v362 = vcombine.low %v346, %v359
    %v364 = vunpack.c.l.s4 1966171168
    %v365 = vunpack.c.0.s8 %v364
    %v366 = vlaneseq
    %v367 = vshrl.u32 %v366, 7
    %v368 = vsub.s32 %v365, %v367
    %v369 = vrot.slane %v362, %v368
    %v371 = vunpack.c.l.s4 1966171168
    %v372 = vunpack.c.0.s8 %v371
    %v373 = vlaneseq
    %v374 = vshrl.u32 %v373, 7
    %v375 = vsub.s32 %v372, %v374
    %v376 = vrot.slane %v369, %v375
    %v378 = vadd.f32 %v317, %v376
    %379 = vst.msk [vmem:[#allocation6] sm:$0x3] %vm315, %v378
    %v380 = vld [vmem:[#allocation8] sm:$0xff]
    %v381 = vld [vmem:[#allocation8 + $0x8] sm:$0xff]
    %v382 = vld [vmem:[%s60] sm:$0xff]
    %v384 = vsel %vm105, %v382, 0
    %386 = vmatprep.subr.mxu0 %v251
    %387 = vmatpush1.msra.mxu0 %v250
    %388 = vmatprep.subr.mxu0 %v253
    %389 = vmatpush1.msra.mxu0 %v252
    %390 = vmatprep.subr.mxu0 %v255
    %391 = vmatpush1.msra.mxu0 %v254
    %392 = vmatprep.subr.mxu0 %v257
    %393 = vmatpush1.msra.mxu0 %v256
    %394 = vmatprep.subr.mxu0 %v259
    %395 = vmatpush1.msra.mxu0 %v258
    %396 = vmatprep.subr.mxu0 %v261
    %397 = vmatpush1.msra.mxu0 %v260
    %398 = vmatprep.subr.mxu0 %v263
    %399 = vmatpush1.msra.mxu0 %v262
    %400 = vmatprep.subr.mxu0 %v265
    %401 = vmatpush1.msra.mxu0 %v264
    %402 = vmatprep.subr.mxu0 0.0
    %403 = vmatpush1.msra.mxu0 0.0
    %404 = vmatprep.subr.mxu0 0.0
    %405 = vmatpush1.msra.mxu0 0.0
    %406 = vmatprep.subr.mxu0 0.0
    %407 = vmatpush1.msra.mxu0 0.0
    %408 = vmatprep.subr.mxu0 0.0
    %409 = vmatpush1.msra.mxu0 0.0
    %410 = vmatprep.subr.mxu0 0.0
    %411 = vmatpush1.msra.mxu0 0.0
    %412 = vmatprep.subr.mxu0 0.0
    %413 = vmatpush1.msra.mxu0 0.0
    %414 = vmatprep.subr.mxu0 0.0
    %415 = vmatpush1.msra.mxu0 0.0
    %416 = vmatprep.subr.mxu0 0.0
    %417 = vmatpush1.msra.mxu0 0.0
    %418 = vmatprep.subr.mxu0 0.0
    %419 = vmatpush1.msra.mxu0 0.0
    %420 = vmatprep.subr.mxu0 0.0
    %421 = vmatpush1.msra.mxu0 0.0
    %422 = vmatprep.subr.mxu0 0.0
    %423 = vmatpush1.msra.mxu0 0.0
    %424 = vmatprep.subr.mxu0 0.0
    %425 = vmatpush1.msra.mxu0 0.0
    %426 = vmatprep.subr.mxu0 0.0
    %427 = vmatpush1.msra.mxu0 0.0
    %428 = vmatprep.subr.mxu0 0.0
    %429 = vmatpush1.msra.mxu0 0.0
    %430 = vmatprep.subr.mxu0 0.0
    %431 = vmatpush1.msra.mxu0 0.0
    %432 = vmatprep.subr.mxu0 0.0
    %433 = vmatpush1.msra.mxu0 0.0
    %434 = vmatprep.subr.mxu0 0.0
    %435 = vmatpush1.msra.mxu0 0.0
    %436 = vmatprep.subr.mxu0 0.0
    %437 = vmatpush1.msra.mxu0 0.0
    %438 = vmatprep.subr.mxu0 0.0
    %439 = vmatpush1.msra.mxu0 0.0
    %440 = vmatprep.subr.mxu0 0.0
    %441 = vmatpush1.msra.mxu0 0.0
    %442 = vmatprep.subr.mxu0 0.0
    %443 = vmatpush1.msra.mxu0 0.0
    %444 = vmatprep.subr.mxu0 0.0
    %445 = vmatpush1.msra.mxu0 0.0
    %446 = vmatprep.subr.mxu0 0.0
    %447 = vmatpush1.msra.mxu0 0.0
    %448 = vmatprep.subr.mxu0 0.0
    %449 = vmatpush1.msra.mxu0 0.0
    %450 = vmatprep.mubr.f32.mxu0 0.0
    %451 = vmatmul.mubr.f32.gmra.mrb[0].mxu0 %v384
    %v452 = vpop.f32.mrb[0].mxu0
    %v453 = vadd.f32 0.0, %v452
    %v454 = vpop.f32.mrb[0].mxu0
    %v455 = vadd.f32 0.0, %v454
    %456 = vdwg.mxu0
    %v457 = vadd.f32 %v380, %v453
    %v458 = vadd.f32 %v381, %v455
    %459 = vst [vmem:[#allocation8] sm:$0xff] %v457
    %460 = vst [vmem:[#allocation8 + $0x8] sm:$0xff] %v458
    // Predicated region
    $region30: #{tpu_custom_call.1} parent=1 // pred_check
      _
    $region31: #{tpu_custom_call.1} parent=1 // pred_check_branch
      %462 = sbr.rel (0) target = $region33
    $region32: #{tpu_custom_call.1} parent=1 // pred_region
      %s464 = ssub.s32 32, 32
      %465 = vsyncadd [#allocation4], %s464
      %s467 = sshll.u32 [#allocation5], 4
      %s468 = int_to_ptr.vmem [resolvable:$true] %s467
      %470 = dma.vmem_to_hbm [thread:$0]  %s468, 32, %s5, [#allocation4]
    $region33: #{tpu_custom_call.1} parent=1 // pred_fallthru
      _
    // Predicated region
    $region34: #{tpu_custom_call.1} parent=1 // pred_check
      _
    $region35: #{tpu_custom_call.1} parent=1 // pred_check_branch
      %472 = sbr.rel (0) target = $region37
    $region36: #{tpu_custom_call.1} parent=1 // pred_region
      %s474 = ssub.s32 32, 32
      %475 = vsyncadd [#allocation7], %s474
      %s477 = sshll.u32 [#allocation6], 4
      %s478 = int_to_ptr.vmem [resolvable:$true] %s477
      %480 = dma.vmem_to_hbm [thread:$0]  %s478, 32, %s6, [#allocation7]
    $region37: #{tpu_custom_call.1} parent=1 // pred_fallthru
      _
    // Predicated region
    $region38: #{tpu_custom_call.1} parent=1 // pred_check
      _
    $region39: #{tpu_custom_call.1} parent=1 // pred_check_branch
      %482 = sbr.rel (0) target = $region41
    $region40: #{tpu_custom_call.1} parent=1 // pred_region
      %s484 = ssub.s32 256, 256
      %485 = vsyncadd [#allocation7], %s484
      %s487 = sshll.u32 [#allocation8], 4
      %s488 = int_to_ptr.vmem [resolvable:$true] %s487
      %490 = dma.vmem_to_hbm [thread:$0]  %s488, 256, %s7, [#allocation7]
    $region41: #{tpu_custom_call.1} parent=1 // pred_fallthru
      _
    // Predicated region
    $region42: #{tpu_custom_call.1} parent=1 // pred_check
      _
    $region43: #{tpu_custom_call.1} parent=1 // pred_check_branch
      %492 = sbr.rel (0) target = $region45
    $region44: #{tpu_custom_call.1} parent=1 // pred_region
      %493 = dma.done [#allocation4], 32
    $region45: #{tpu_custom_call.1} parent=1 // pred_fallthru
      _
    // Predicated region
    $region46: #{tpu_custom_call.1} parent=1 // pred_check
      _
    $region47: #{tpu_custom_call.1} parent=1 // pred_check_branch
      %495 = sbr.rel (0) target = $region49
    $region48: #{tpu_custom_call.1} parent=1 // pred_region
      %496 = dma.done [#allocation7], 32
    $region49: #{tpu_custom_call.1} parent=1 // pred_fallthru
      _
    // Predicated region
    $region50: #{tpu_custom_call.1} parent=1 // pred_check
      _
    $region51: #{tpu_custom_call.1} parent=1 // pred_check_branch
      %498 = sbr.rel (0) target = $region53
    $region52: #{tpu_custom_call.1} parent=1 // pred_region
      %499 = dma.done [#allocation7], 256
    $region53: #{tpu_custom_call.1} parent=1 // pred_fallthru
      _
    %500 = vsyncpa [#allocation3], 1
    %501 = vsyncpa [#allocation4], 1
    %502 = vsyncpa [#allocation7], 1

</llo_original>
